<compile_context>
chip_gen: v5e
topology: v5e:2x2
jax: 0.10.0
libtpu: 0.0.40
codegen_flags: <defaults>
</compile_context>

<pallas_src>
import functools
import math

import jax
import jax.numpy as jnp
from jax import lax
from jax.experimental import pallas as pl
from jax.experimental.pallas import tpu as pltpu


# ---------------------------------------------------------------------------
# Config
# ---------------------------------------------------------------------------

MATMUL_DTYPE = jnp.bfloat16   # MXU operand dtype (weights + activations)
ACT_DTYPE = jnp.bfloat16      # activation dtype streamed between kernels
LN_EPS = 1e-12                # BERT LayerNorm eps

# Large tile preferences: full-K blocks for BERT (K=768/3072) delete the k-loop,
# TN up to 1024 keeps grid-step overhead below MXU time. ~9 MiB double-buffered
# at 512x1024x1024 bf16 -> fits the 32 MiB scoped budget on all generations.
TM_PREF, TN_PREF, TK_PREF = 512, 1024, 1024
VMEM_LIMIT = 32 * 1024 * 1024  # safe on v5e/v6e (128 MiB) and v7x (64 MiB physical)


def _pick_tile(dim, pref, align):
    """Largest tile <= pref that divides dim and is a multiple of `align`;
    falls back to the full dim (full-extent blocks are always legal)."""
    if dim <= pref:
        return dim
    t = (pref // align) * align
    while t >= align:
        if dim % t == 0:
            return t
        t -= align
    # TODO(synk): for large poorly-factorable dims this fallback can exceed the
    # VMEM budget; pad such inputs to a tileable size before calling the kernel.
    return dim


# ---------------------------------------------------------------------------
# Tiled linear kernel:  y = act(x @ w + b)    (bf16 in, bf16 out, fp32 acc)
# ---------------------------------------------------------------------------

def _linear_kernel(x_ref, w_ref, b_ref, o_ref, acc_ref, *, act):
    @pl.when(pl.program_id(2) == 0)
    def _():
        acc_ref[...] = jnp.zeros_like(acc_ref)

    acc_ref[...] += jnp.dot(x_ref[...], w_ref[...],
                            preferred_element_type=jnp.float32)

    @pl.when(pl.program_id(2) == pl.num_programs(2) - 1)
    def _():
        y = acc_ref[...] + b_ref[...]
        if act == "gelu":
            # TODO(synk): HF BERT uses exact (erf) gelu; tanh approximation kept for
            # Mosaic-friendly lowering (small numeric divergence).
            y = jax.nn.gelu(y, approximate=True)
        elif act == "tanh":
            y = jnp.tanh(y)
        o_ref[...] = y.astype(o_ref.dtype)


def pallas_linear(x, w, b, act=None, out_dtype=ACT_DTYPE):
    M, K = x.shape
    N = w.shape[1]
    tm = _pick_tile(M, TM_PREF, 16)     # 16-row align: dense bf16 sublane packing
    tn = _pick_tile(N, TN_PREF, 128)
    tk = _pick_tile(K, TK_PREF, 128)
    grid = (M // tm, N // tn, K // tk)
    bytes_accessed = int(M * K * x.dtype.itemsize + K * N * w.dtype.itemsize
                         + N * 4 + M * N * jnp.dtype(out_dtype).itemsize)
    return pl.pallas_call(
        functools.partial(_linear_kernel, act=act),
        out_shape=jax.ShapeDtypeStruct((M, N), out_dtype),
        grid_spec=pltpu.PrefetchScalarGridSpec(
            num_scalar_prefetch=0,
            grid=grid,
            in_specs=[
                pl.BlockSpec((tm, tk), lambda i, j, k: (i, k)),
                pl.BlockSpec((tk, tn), lambda i, j, k: (k, j)),
                pl.BlockSpec((1, tn), lambda i, j, k: (0, j)),
            ],
            out_specs=pl.BlockSpec((tm, tn), lambda i, j, k: (i, j)),
            scratch_shapes=[pltpu.VMEM((tm, tn), jnp.float32)],
        ),
        compiler_params=pltpu.CompilerParams(
            dimension_semantics=("parallel", "parallel", "arbitrary"),
            vmem_limit_bytes=VMEM_LIMIT),
        cost_estimate=pl.CostEstimate(
            flops=2 * M * N * K,
            transcendentals=(M * N if act else 0),
            bytes_accessed=bytes_accessed),
    )(x, w, b.reshape(1, N))


# ---------------------------------------------------------------------------
# Fused linear + residual-add + LayerNorm kernel
#   o = LayerNorm(x @ w + b + residual) * gamma + beta    (bf16 in/out, fp32 math)
# ---------------------------------------------------------------------------

def _linear_res_ln_kernel(x_ref, w_ref, b_ref, r_ref, g_ref, bt_ref, o_ref, acc_ref):
    @pl.when(pl.program_id(1) == 0)
    def _():
        acc_ref[...] = jnp.zeros_like(acc_ref)

    acc_ref[...] += jnp.dot(x_ref[...], w_ref[...],
                            preferred_element_type=jnp.float32)

    @pl.when(pl.program_id(1) == pl.num_programs(1) - 1)
    def _():
        y = acc_ref[...] + b_ref[...] + r_ref[...].astype(jnp.float32)
        mean = jnp.mean(y, axis=-1, keepdims=True)
        var = jnp.mean((y - mean) ** 2, axis=-1, keepdims=True)
        y = (y - mean) * lax.rsqrt(var + LN_EPS)
        o_ref[...] = (y * g_ref[...] + bt_ref[...]).astype(o_ref.dtype)


def pallas_linear_residual_layernorm(x, w, b, residual, gamma, beta):
    M, K = x.shape
    N = w.shape[1]
    tm = _pick_tile(M, TM_PREF, 16)
    tk = _pick_tile(K, TK_PREF, 128)
    grid = (M // tm, K // tk)
    bytes_accessed = int(M * K * x.dtype.itemsize + K * N * w.dtype.itemsize
                         + 2 * M * N * 2 + 3 * N * 4)
    return pl.pallas_call(
        _linear_res_ln_kernel,
        out_shape=jax.ShapeDtypeStruct((M, N), ACT_DTYPE),
        grid_spec=pltpu.PrefetchScalarGridSpec(
            num_scalar_prefetch=0,
            grid=grid,
            in_specs=[
                pl.BlockSpec((tm, tk), lambda i, k: (i, k)),
                pl.BlockSpec((tk, N), lambda i, k: (k, 0)),
                pl.BlockSpec((1, N), lambda i, k: (0, 0)),
                pl.BlockSpec((tm, N), lambda i, k: (i, 0)),
                pl.BlockSpec((1, N), lambda i, k: (0, 0)),
                pl.BlockSpec((1, N), lambda i, k: (0, 0)),
            ],
            out_specs=pl.BlockSpec((tm, N), lambda i, k: (i, 0)),
            scratch_shapes=[pltpu.VMEM((tm, N), jnp.float32)],
        ),
        compiler_params=pltpu.CompilerParams(
            dimension_semantics=("parallel", "arbitrary"),
            vmem_limit_bytes=VMEM_LIMIT),
        cost_estimate=pl.CostEstimate(
            flops=2 * M * N * K + 8 * M * N,
            transcendentals=0,
            bytes_accessed=bytes_accessed),
    )(x, w, b.reshape(1, N), residual, gamma.reshape(1, N), beta.reshape(1, N))


# ---------------------------------------------------------------------------
# Fused embedding add (token + position + type) + LayerNorm, per batch element
# ---------------------------------------------------------------------------

def _emb_ln_kernel(tok_ref, pos_ref, typ_ref, g_ref, b_ref, o_ref):
    x = tok_ref[...] + pos_ref[...] + typ_ref[...]          # (S, H) fp32
    mean = jnp.mean(x, axis=-1, keepdims=True)
    var = jnp.mean((x - mean) ** 2, axis=-1, keepdims=True)
    y = (x - mean) * lax.rsqrt(var + LN_EPS)
    o_ref[...] = (y * g_ref[...] + b_ref[...]).astype(o_ref.dtype)


def pallas_embed_layernorm(tok, pos, typ, gamma, beta):
    B, S, H = tok.shape
    return pl.pallas_call(
        _emb_ln_kernel,
        out_shape=jax.ShapeDtypeStruct((B, S, H), ACT_DTYPE),
        grid=(B,),
        in_specs=[
            pl.BlockSpec((None, S, H), lambda b: (b, 0, 0)),
            pl.BlockSpec((S, H), lambda b: (0, 0)),
            pl.BlockSpec((1, H), lambda b: (0, 0)),
            pl.BlockSpec((1, H), lambda b: (0, 0)),
            pl.BlockSpec((1, H), lambda b: (0, 0)),
        ],
        out_specs=pl.BlockSpec((None, S, H), lambda b: (b, 0, 0)),
        compiler_params=pltpu.CompilerParams(
            dimension_semantics=("parallel",),
            vmem_limit_bytes=VMEM_LIMIT),
    )(tok, pos, typ, gamma.reshape(1, H), beta.reshape(1, H))


# ---------------------------------------------------------------------------
# Attention: one batch element per grid step, per-head 2-D MXU dots.
# Reads the fused QKV output (B, S, 3H) directly (no head-split transpose in XLA)
# and writes a head-merged (S, H) bf16 block (no head-merge transpose in XLA).
# ---------------------------------------------------------------------------

def _attn_kernel(qkv_ref, m_ref, o_ref, *, n_heads, head_dim, scale):
    H = n_heads * head_dim
    m = m_ref[...]                                           # (1, S) additive mask
    # Static per-head loop: only one (S, S) score/prob tile live at a time, so the
    # per-step working set stays tiny (no (NH, S, S) materialization).
    for h in range(n_heads):
        q = qkv_ref[:, h * head_dim:(h + 1) * head_dim] * scale          # (S, D) bf16
        k = qkv_ref[:, H + h * head_dim:H + (h + 1) * head_dim]          # (S, D) bf16
        v = qkv_ref[:, 2 * H + h * head_dim:2 * H + (h + 1) * head_dim]  # (S, D) bf16
        s = lax.dot_general(q, k, (((1,), (1,)), ((), ())),
                            preferred_element_type=jnp.float32)          # (S, S)
        s = s + m                                            # mask shared across heads
        s = s - jnp.max(s, axis=-1, keepdims=True)
        p = jnp.exp(s)
        p = p / jnp.sum(p, axis=-1, keepdims=True)           # exact softmax division
        ctx = jnp.dot(p.astype(v.dtype), v,
                      preferred_element_type=jnp.float32)    # (S, D)
        o_ref[:, h * head_dim:(h + 1) * head_dim] = ctx.astype(o_ref.dtype)


def pallas_attention(qkv, addmask, n_heads, head_dim):
    # qkv: (B, S, 3H) bf16; addmask: (B, 1, S) fp32 additive (0 / -10000)
    B, S, H3 = qkv.shape
    H = H3 // 3
    scale = 1.0 / math.sqrt(head_dim)
    return pl.pallas_call(
        functools.partial(_attn_kernel, n_heads=n_heads, head_dim=head_dim,
                          scale=scale),
        out_shape=jax.ShapeDtypeStruct((B, S, H), ACT_DTYPE),
        grid=(B,),
        in_specs=[
            pl.BlockSpec((None, S, H3), lambda b: (b, 0, 0)),
            pl.BlockSpec((None, 1, S), lambda b: (b, 0, 0)),
        ],
        out_specs=pl.BlockSpec((None, S, H), lambda b: (b, 0, 0)),
        compiler_params=pltpu.CompilerParams(
            dimension_semantics=("parallel",),
            vmem_limit_bytes=VMEM_LIMIT),
        cost_estimate=pl.CostEstimate(
            flops=4 * B * n_heads * S * S * head_dim,
            transcendentals=B * n_heads * S * S,
            bytes_accessed=int(B * S * H3 * qkv.dtype.itemsize
                               + B * S * 4 + B * S * H * 2)),
    )(qkv, addmask)


# ---------------------------------------------------------------------------
# Fused pooler (tanh) + classifier (+ optional weighted cross-entropy) head
# ---------------------------------------------------------------------------

def _head_kernel(*refs, with_loss):
    if with_loss:
        (cls_ref, pw_ref, pb_ref, cw_ref, cb_ref,
         oh_ref, wt_ref, logit_ref, loss_ref) = refs
    else:
        cls_ref, pw_ref, pb_ref, cw_ref, cb_ref, logit_ref = refs

    pooled = jnp.tanh(jnp.dot(cls_ref[...], pw_ref[...],
                              preferred_element_type=jnp.float32) + pb_ref[...])
    logits = jnp.dot(pooled.astype(cw_ref.dtype), cw_ref[...],
                     preferred_element_type=jnp.float32) + cb_ref[...]
    logit_ref[...] = logits

    if with_loss:
        zmax = jnp.max(logits, axis=-1, keepdims=True)
        lse = zmax + jnp.log(jnp.sum(jnp.exp(logits - zmax), axis=-1, keepdims=True))
        zy = jnp.sum(oh_ref[...] * logits, axis=-1, keepdims=True)       # (B,1)
        wy = jnp.sum(oh_ref[...] * wt_ref[...], axis=-1, keepdims=True)  # (B,1)
        # torch CrossEntropyLoss(weight=w): sum_i w[y_i]*nll_i / sum_i w[y_i]
        num = jnp.sum(wy * (lse - zy), axis=0, keepdims=True)            # (1,1)
        den = jnp.sum(wy, axis=0, keepdims=True)                         # (1,1)
        loss_ref[...] = num / den


def pallas_pooler_classifier(cls_tok, pool_w, pool_b, cls_w, cls_b,
                             one_hot=None, class_weights=None):
    B, H = cls_tok.shape
    C = cls_w.shape[1]
    with_loss = one_hot is not None
    full = lambda shape: pl.BlockSpec(shape, lambda i: tuple(0 for _ in shape))

    in_specs = [full((B, H)), full((H, H)), full((1, H)), full((H, C)), full((1, C))]
    args = [cls_tok, pool_w, pool_b.reshape(1, H), cls_w, cls_b.reshape(1, C)]
    if with_loss:
        in_specs += [full((B, C)), full((1, C))]
        args += [one_hot, class_weights.reshape(1, C)]
        out_shape = (jax.ShapeDtypeStruct((B, C), jnp.float32),
                     jax.ShapeDtypeStruct((1, 1), jnp.float32))
        out_specs = (full((B, C)), full((1, 1)))
    else:
        out_shape = jax.ShapeDtypeStruct((B, C), jnp.float32)
        out_specs = full((B, C))

    out = pl.pallas_call(
        functools.partial(_head_kernel, with_loss=with_loss),
        out_shape=out_shape,
        grid=(1,),
        in_specs=in_specs,
        out_specs=out_specs,
        compiler_params=pltpu.CompilerParams(vmem_limit_bytes=VMEM_LIMIT),
    )(*args)
    if with_loss:
        logits, loss = out
        return logits, loss[0, 0]
    return out, None


# ---------------------------------------------------------------------------
# Model (small synthetic BERT config + pooler + classifier)
# ---------------------------------------------------------------------------

def init_params(key, *, vocab, max_pos, hidden, n_heads, inter, n_layers, n_classes):
    keys = iter(jax.random.split(key, 16 + 8 * n_layers))
    scale = 0.02

    def dense(k, fan_in, fan_out):
        # weights stored in bf16 (MXU operand dtype); biases / LN params fp32
        return (scale * jax.random.normal(k, (fan_in, fan_out), jnp.float32)
                ).astype(MATMUL_DTYPE)

    p = {
        "word_emb": scale * jax.random.normal(next(keys), (vocab, hidden), jnp.float32),
        "pos_emb": scale * jax.random.normal(next(keys), (max_pos, hidden), jnp.float32),
        "type_emb": scale * jax.random.normal(next(keys), (2, hidden), jnp.float32),
        "emb_ln_g": jnp.ones((hidden,), jnp.float32),
        "emb_ln_b": jnp.zeros((hidden,), jnp.float32),
        "pool_w": dense(next(keys), hidden, hidden),
        "pool_b": jnp.zeros((hidden,), jnp.float32),
        "cls_w": dense(next(keys), hidden, n_classes),
        "cls_b": jnp.zeros((n_classes,), jnp.float32),
        "class_weights": jnp.array([1.0, 2.0, 0.5][:n_classes], jnp.float32),
        "layers": [],
    }
    for _ in range(n_layers):
        layer = {
            # fused QKV projection weights: (H, 3H), biases (3H,)
            "qkv_w": dense(next(keys), hidden, 3 * hidden),
            "qkv_b": jnp.zeros((3 * hidden,), jnp.float32),
            "ao_w": dense(next(keys), hidden, hidden),
            "ao_b": jnp.zeros((hidden,), jnp.float32),
            "a_ln_g": jnp.ones((hidden,), jnp.float32),
            "a_ln_b": jnp.zeros((hidden,), jnp.float32),
            "i_w": dense(next(keys), hidden, inter),
            "i_b": jnp.zeros((inter,), jnp.float32),
            "o_w": dense(next(keys), inter, hidden),
            "o_b": jnp.zeros((hidden,), jnp.float32),
            "o_ln_g": jnp.ones((hidden,), jnp.float32),
            "o_ln_b": jnp.zeros((hidden,), jnp.float32),
        }
        p["layers"].append(layer)
    return p


def beto_classifier_forward(params, input_ids, attention_mask, labels=None,
                            *, n_heads):
    B, S = input_ids.shape
    H = params["word_emb"].shape[1]
    D = H // n_heads
    C = params["cls_w"].shape[1]

    # ---- embeddings: gather in XLA, add + LayerNorm fused in one kernel ----
    tok = params["word_emb"][input_ids]                      # (B,S,H) fp32 gather
    pos = params["pos_emb"][:S]                              # (S,H)
    typ = params["type_emb"][0:1]                            # (1,H) token_type_ids == 0
    h = pallas_embed_layernorm(tok, pos, typ,
                               params["emb_ln_g"], params["emb_ln_b"])   # (B,S,H) bf16
    h = h.reshape(B * S, H)

    # additive attention mask, one row per batch element (heads share it in-kernel)
    addmask = ((1.0 - attention_mask.astype(jnp.float32)) * -10000.0)[:, None, :]  # (B,1,S)

    # ---- transformer encoder layers ----
    for layer in params["layers"]:
        # fused QKV projection: one (H, 3H) matmul, bf16 output
        qkv = pallas_linear(h, layer["qkv_w"], layer["qkv_b"])            # (B*S, 3H) bf16
        # attention reads the (B,S,3H) slab directly; writes head-merged (B,S,H) bf16
        ctx = pallas_attention(qkv.reshape(B, S, 3 * H), addmask, n_heads, D)
        # attention output projection + residual + LayerNorm fused
        h = pallas_linear_residual_layernorm(
            ctx.reshape(B * S, H), layer["ao_w"], layer["ao_b"], h,
            layer["a_ln_g"], layer["a_ln_b"])
        # feed-forward (gelu) + output projection + residual + LayerNorm fused
        inter = pallas_linear(h, layer["i_w"], layer["i_b"], act="gelu")  # bf16
        h = pallas_linear_residual_layernorm(
            inter, layer["o_w"], layer["o_b"], h,
            layer["o_ln_g"], layer["o_ln_b"])

    # ---- pooler + dropout(eval: identity) + classifier (+ weighted CE) fused ----
    cls_tok = h.reshape(B, S, H)[:, 0, :]                     # (B,H) bf16
    one_hot = None
    if labels is not None:
        one_hot = jax.nn.one_hot(labels, C, dtype=jnp.float32)
    logits, loss = pallas_pooler_classifier(
        cls_tok, params["pool_w"], params["pool_b"],
        params["cls_w"], params["cls_b"],
        one_hot=one_hot, class_weights=params["class_weights"])
    return {"logits": logits, "loss": loss}


# ---------------------------------------------------------------------------
# Main
# ---------------------------------------------------------------------------

if __name__ == "__main__":
    B, S = 2, 8
    HIDDEN, N_HEADS, INTER, N_LAYERS = 32, 4, 64, 2
    VOCAB, MAX_POS, N_CLASSES = 50, 16, 3

    key = jax.random.PRNGKey(0)
    kp, ki, kl = jax.random.split(key, 3)

    params = init_params(
        kp, vocab=VOCAB, max_pos=MAX_POS, hidden=HIDDEN,
        n_heads=N_HEADS, inter=INTER, n_layers=N_LAYERS, n_classes=N_CLASSES)

    input_ids = jax.random.randint(ki, (B, S), 0, VOCAB, dtype=jnp.int32)
    attention_mask = jnp.array([[1] * S, [1] * (S - 2) + [0] * 2], dtype=jnp.int32)
    labels = jax.random.randint(kl, (B,), 0, N_CLASSES, dtype=jnp.int32)

    out = beto_classifier_forward(params, input_ids, attention_mask, labels,
                                  n_heads=N_HEADS)
    logits = jax.block_until_ready(out["logits"])
    loss = jax.block_until_ready(out["loss"])

    assert logits.shape == (B, N_CLASSES)
    assert bool(jnp.all(jnp.isfinite(logits)))
    assert bool(jnp.isfinite(loss))
    print("KERNEL_OK")
</pallas_src>

<mosaic_0001>
module attributes {stable_mosaic.version = 11 : i64} {
  func.func @_emb_ln_kernel(%arg0: i32, %arg1: memref<1x8x32xf32, #tpu.memory_space<vmem>>, %arg2: memref<8x32xf32, #tpu.memory_space<vmem>>, %arg3: memref<1x32xf32, #tpu.memory_space<vmem>>, %arg4: memref<1x32xf32, #tpu.memory_space<vmem>>, %arg5: memref<1x32xf32, #tpu.memory_space<vmem>>, %arg6: memref<1x8x32xbf16, #tpu.memory_space<vmem>>) attributes {dimension_semantics = [#tpu.dimension_semantics<parallel>], iteration_bounds = array<i64: 2>, scalar_prefetch = 0 : i64, scratch_operands = 0 : i64, tpu.core_type = #tpu.core_type<tc>, window_params = [{transform_indices = @transform_0, window_bounds = array<i64: 1, 8, 32>}, {pipeline_mode = #tpu.pipeline_mode<synchronous>, transform_indices = @transform_1, window_bounds = array<i64: 8, 32>}, {pipeline_mode = #tpu.pipeline_mode<synchronous>, transform_indices = @transform_2, window_bounds = array<i64: 1, 32>}, {pipeline_mode = #tpu.pipeline_mode<synchronous>, transform_indices = @transform_3, window_bounds = array<i64: 1, 32>}, {pipeline_mode = #tpu.pipeline_mode<synchronous>, transform_indices = @transform_4, window_bounds = array<i64: 1, 32>}, {transform_indices = @transform_5, window_bounds = array<i64: 1, 8, 32>}]} {
    %c0 = arith.constant 0 : index
    %c0_0 = arith.constant 0 : index
    %c0_1 = arith.constant 0 : index
    %0 = vector.load %arg1[%c0, %c0_0, %c0_1] : memref<1x8x32xf32, #tpu.memory_space<vmem>>, vector<1x8x32xf32>
    %1 = vector.shape_cast %0 : vector<1x8x32xf32> to vector<8x32xf32>
    %c0_2 = arith.constant 0 : index
    %c0_3 = arith.constant 0 : index
    %2 = vector.load %arg2[%c0_2, %c0_3] : memref<8x32xf32, #tpu.memory_space<vmem>>, vector<8x32xf32>
    %3 = arith.addf %1, %2 : vector<8x32xf32>
    %c0_4 = arith.constant 0 : index
    %c0_5 = arith.constant 0 : index
    %4 = vector.load %arg3[%c0_4, %c0_5] : memref<1x32xf32, #tpu.memory_space<vmem>>, vector<1x32xf32>
    %5 = vector.broadcast %4 : vector<1x32xf32> to vector<8x32xf32>
    %6 = arith.addf %3, %5 : vector<8x32xf32>
    %cst = arith.constant dense<0.000000e+00> : vector<8xf32>
    %7 = vector.multi_reduction <add>, %6, %cst [1] : vector<8x32xf32> to vector<8xf32>
    %8 = vector.shape_cast %7 : vector<8xf32> to vector<8x1xf32>
    %cst_6 = arith.constant 3.200000e+01 : f32
    %9 = vector.broadcast %cst_6 : f32 to vector<8x1xf32>
    %10 = arith.divf %8, %9 : vector<8x1xf32>
    %11 = vector.broadcast %10 : vector<8x1xf32> to vector<8x32xf32>
    %12 = arith.subf %6, %11 : vector<8x32xf32>
    %13 = arith.mulf %12, %12 : vector<8x32xf32>
    %cst_7 = arith.constant dense<0.000000e+00> : vector<8xf32>
    %14 = vector.multi_reduction <add>, %13, %cst_7 [1] : vector<8x32xf32> to vector<8xf32>
    %15 = vector.shape_cast %14 : vector<8xf32> to vector<8x1xf32>
    %cst_8 = arith.constant 3.200000e+01 : f32
    %16 = vector.broadcast %cst_8 : f32 to vector<8x1xf32>
    %17 = arith.divf %15, %16 : vector<8x1xf32>
    %18 = vector.broadcast %10 : vector<8x1xf32> to vector<8x32xf32>
    %19 = arith.subf %6, %18 : vector<8x32xf32>
    %cst_9 = arith.constant 9.99999996E-13 : f32
    %20 = vector.broadcast %cst_9 : f32 to vector<8x1xf32>
    %21 = arith.addf %17, %20 : vector<8x1xf32>
    %22 = math.rsqrt %21 : vector<8x1xf32>
    %23 = vector.broadcast %22 : vector<8x1xf32> to vector<8x32xf32>
    %24 = arith.mulf %19, %23 : vector<8x32xf32>
    %c0_10 = arith.constant 0 : index
    %c0_11 = arith.constant 0 : index
    %25 = vector.load %arg4[%c0_10, %c0_11] : memref<1x32xf32, #tpu.memory_space<vmem>>, vector<1x32xf32>
    %26 = vector.broadcast %25 : vector<1x32xf32> to vector<8x32xf32>
    %27 = arith.mulf %24, %26 : vector<8x32xf32>
    %c0_12 = arith.constant 0 : index
    %c0_13 = arith.constant 0 : index
    %28 = vector.load %arg5[%c0_12, %c0_13] : memref<1x32xf32, #tpu.memory_space<vmem>>, vector<1x32xf32>
    %29 = vector.broadcast %28 : vector<1x32xf32> to vector<8x32xf32>
    %30 = arith.addf %27, %29 : vector<8x32xf32>
    %31 = arith.truncf %30 : vector<8x32xf32> to vector<8x32xbf16>
    %c0_14 = arith.constant 0 : index
    %c0_15 = arith.constant 0 : index
    %c0_16 = arith.constant 0 : index
    %32 = vector.load %arg6[%c0_14, %c0_15, %c0_16] : memref<1x8x32xbf16, #tpu.memory_space<vmem>>, vector<1x8x32xbf16>
    %33 = vector.shape_cast %32 : vector<1x8x32xbf16> to vector<8x32xbf16>
    %34 = vector.shape_cast %31 : vector<8x32xbf16> to vector<1x8x32xbf16>
    tpu.vector_store %arg6[%c0_14, %c0_15, %c0_16], %34 {strides = array<i32>} : memref<1x8x32xbf16, #tpu.memory_space<vmem>>, vector<1x8x32xbf16>,
    return
  }
  func.func @transform_0(%arg0: i32) -> (i32, i32, i32) {
    %c0_i32 = arith.constant 0 : i32
    %c0_i32_0 = arith.constant 0 : i32
    %c0_i32_1 = arith.constant 0 : i32
    return %arg0, %c0_i32, %c0_i32_0 : i32, i32, i32
  }
  func.func @transform_1(%arg0: i32) -> (i32, i32) {
    %c0_i32 = arith.constant 0 : i32
    %c0_i32_0 = arith.constant 0 : i32
    %c0_i32_1 = arith.constant 0 : i32
    return %c0_i32, %c0_i32_0 : i32, i32
  }
  func.func @transform_2(%arg0: i32) -> (i32, i32) {
    %c0_i32 = arith.constant 0 : i32
    %c0_i32_0 = arith.constant 0 : i32
    %c0_i32_1 = arith.constant 0 : i32
    return %c0_i32, %c0_i32_0 : i32, i32
  }
  func.func @transform_3(%arg0: i32) -> (i32, i32) {
    %c0_i32 = arith.constant 0 : i32
    %c0_i32_0 = arith.constant 0 : i32
    %c0_i32_1 = arith.constant 0 : i32
    return %c0_i32, %c0_i32_0 : i32, i32
  }
  func.func @transform_4(%arg0: i32) -> (i32, i32) {
    %c0_i32 = arith.constant 0 : i32
    %c0_i32_0 = arith.constant 0 : i32
    %c0_i32_1 = arith.constant 0 : i32
    return %c0_i32, %c0_i32_0 : i32, i32
  }
  func.func @transform_5(%arg0: i32) -> (i32, i32, i32) {
    %c0_i32 = arith.constant 0 : i32
    %c0_i32_0 = arith.constant 0 : i32
    %c0_i32_1 = arith.constant 0 : i32
    return %arg0, %c0_i32, %c0_i32_0 : i32, i32, i32
  }
}

</mosaic_0001>

<llo_original>
// kernel: tpu_custom_call.1
$region0: #{tpu_custom_call.1}
  #allocation0 [shape = 'u32[]', space=smem, size = 0x4, offset = 0x4, fixed_abs, tag = 'smem constant byte address 0x4 - core index']
  #allocation1 [shape = 'u32[72,128]{1,0:T(1,128)}', space=vmem, size = 0x9000, scoped, tag = 'internal scratch']
  %s0 = inlined_call_operand.hbm [shape: f32[2,8,32], index: 0, kind: input, shape index: {}]
  %s1 = inlined_call_operand.hbm [shape: f32[8,32], index: 1, kind: input, shape index: {}]
  %s2 = inlined_call_operand.vmem [shape: f32[1,32], index: 2, kind: input, shape index: {}]
  %s3 = inlined_call_operand.vmem [shape: f32[1,32], index: 3, kind: input, shape index: {}]
  %s4 = inlined_call_operand.vmem [shape: f32[1,32], index: 4, kind: input, shape index: {}]
  %s5 = inlined_call_operand.hbm [shape: bf16[2,8,32], index: 5, kind: output, shape index: {}]
  %s6 = sld [smem:[#allocation0]]
  $region61: #{tpu_custom_call.1} parent=0
    _
  %s8 = ssub.s32 1, %s6
  %s9 = scalar_select 0, %s8, %s6
  $region1: #{tpu_custom_call.1} parent=0
    #allocation2 [shape = 'u8[8192]{0}', space=vmem, size = 0x2000, scoped, tag = 'input window, operand 0']
    #allocation3 [shape = 's32[2]{0}', space=sflag, size = 0x8, scoped, tag = 'scoped memory for tpu_custom_call.1']
    #allocation4 [shape = 's32[2]{0}', space=sflag, size = 0x8, scoped, tag = 'scoped memory for tpu_custom_call.1']
    #allocation5 [shape = 'u8[4096]{0}', space=vmem, size = 0x1000, scoped, tag = 'input window, operand 1, single buffered']
    #allocation6 [shape = 's32[1]{0}', space=sflag, size = 0x4, scoped, tag = 'scoped memory for tpu_custom_call.1']
    #allocation7 [shape = 'u8[4096]{0}', space=vmem, size = 0x1000, scoped, tag = 'output window, operand 0']
    %10 = vsyncpa [#allocation3], 0
    %s11 = scalar_lea.sflag [#allocation3], 1
    %12 = vsyncpa %s11, 0
    %13 = vsyncpa [#allocation6], 0
    %14 = vsyncpa [#allocation4], 0
    %s15 = scalar_lea.sflag [#allocation4], 1
    %16 = vsyncpa %s15, 0
    loop: start=0, step=1, limit=4
    $region2: #{tpu_custom_call.1} parent=1 // loop_pre_header
      _
    $region3: #{tpu_custom_call.1} parent=1 // loop_header
      %s18 = sphi 0, %s22
      %p19 = scmp.ge.s32.totalorder %s18, 4
      %s28 = sphi 0, %s30
      %s31 = sphi 0, %s28
      %s32 = sphi 0, %s31
      %s48 = sphi 0, %s32
      %s52 = sphi 0, %s52
      %s54 = sphi 0, %s52
      %s55 = sphi 0, %s54
      %s69 = sphi 0, %s55
      %s73 = sphi 0, %s73
      %s75 = sphi 0, %s73
      %s76 = sphi 0, %s75
      %s90 = sphi 0, %s76
      %s94 = sphi 0, %s94
      %s96 = sphi 0, %s94
      %s97 = sphi 0, %s96
      %s111 = sphi 0, %s97
      %s115 = sphi 0, %s115
      %s117 = sphi 0, %s115
      %s118 = sphi 0, %s117
      %s132 = sphi 0, %s118
      %s138 = sphi 0, %s140
      %s141 = sphi 0, %s138
      %s142 = sphi 0, %s141
      %s158 = sphi 0, %s142
    $region4: #{tpu_custom_call.1} parent=1 // loop_header_branch
      %21 = sbr.rel (%p19) target = $region8
    $region5: #{tpu_custom_call.1} parent=1 // loop_body
      %s23 = ssub.s32 %s18, 1
      %s24 = ssub.s32 %s18, 2
      %s25 = sadd.s32 %s18, 1
      %s26 = ssub.s32 %s18, %s25
      %p27 = scmp.eq.s32.totalorder %s26, 0
      %s29 = sadd.s32 %s28, 1
      %s30 = scalar_select %p27, %s28, %s29
      %p33 = pneg %p27
      %p34 = scmp.eq.s32.totalorder %s18, 1
      %p35 = por %p33, %p34
      %p36 = scmp.ne.s32.totalorder %s28, %s31
      %p37 = scmp.eq.s32.totalorder %s18, 0
      %p38 = por %p36, %p37
      %p39 = scmp.ne.s32.totalorder %s28, %s31
      %p40 = scmp.eq.s32.totalorder %s23, 1
      %p41 = por %p39, %p40
      %p42 = scmp.ne.s32.totalorder %s31, %s32
      %p43 = scmp.eq.s32.totalorder %s23, 0
      %p44 = por %p42, %p43
      %p45 = scmp.ne.s32.totalorder %s31, %s32
      %p46 = scmp.eq.s32.totalorder %s24, 1
      %p47 = por %p45, %p46
      %p49 = scmp.ne.s32.totalorder %s32, %s48
      %p50 = scmp.eq.s32.totalorder %s24, 0
      %p51 = por %p49, %p50
      %s53 = sadd.s32 %s52, 1
      %p56 = scmp.eq.s32.totalorder %s18, 1
      %p57 = scmp.ne.s32.totalorder %s52, %s54
      %p58 = scmp.eq.s32.totalorder %s18, 0
      %p59 = por %p57, %p58
      %p60 = scmp.ne.s32.totalorder %s52, %s54
      %p61 = scmp.eq.s32.totalorder %s23, 1
      %p62 = por %p60, %p61
      %p63 = scmp.ne.s32.totalorder %s54, %s55
      %p64 = scmp.eq.s32.totalorder %s23, 0
      %p65 = por %p63, %p64
      %p66 = scmp.ne.s32.totalorder %s54, %s55
      %p67 = scmp.eq.s32.totalorder %s24, 1
      %p68 = por %p66, %p67
      %p70 = scmp.ne.s32.totalorder %s55, %s69
      %p71 = scmp.eq.s32.totalorder %s24, 0
      %p72 = por %p70, %p71
      %s74 = sadd.s32 %s73, 1
      %p77 = scmp.eq.s32.totalorder %s18, 1
      %p78 = scmp.ne.s32.totalorder %s73, %s75
      %p79 = scmp.eq.s32.totalorder %s18, 0
      %p80 = por %p78, %p79
      %p81 = scmp.ne.s32.totalorder %s73, %s75
      %p82 = scmp.eq.s32.totalorder %s23, 1
      %p83 = por %p81, %p82
      %p84 = scmp.ne.s32.totalorder %s75, %s76
      %p85 = scmp.eq.s32.totalorder %s23, 0
      %p86 = por %p84, %p85
      %p87 = scmp.ne.s32.totalorder %s75, %s76
      %p88 = scmp.eq.s32.totalorder %s24, 1
      %p89 = por %p87, %p88
      %p91 = scmp.ne.s32.totalorder %s76, %s90
      %p92 = scmp.eq.s32.totalorder %s24, 0
      %p93 = por %p91, %p92
      %s95 = sadd.s32 %s94, 1
      %p98 = scmp.eq.s32.totalorder %s18, 1
      %p99 = scmp.ne.s32.totalorder %s94, %s96
      %p100 = scmp.eq.s32.totalorder %s18, 0
      %p101 = por %p99, %p100
      %p102 = scmp.ne.s32.totalorder %s94, %s96
      %p103 = scmp.eq.s32.totalorder %s23, 1
      %p104 = por %p102, %p103
      %p105 = scmp.ne.s32.totalorder %s96, %s97
      %p106 = scmp.eq.s32.totalorder %s23, 0
      %p107 = por %p105, %p106
      %p108 = scmp.ne.s32.totalorder %s96, %s97
      %p109 = scmp.eq.s32.totalorder %s24, 1
      %p110 = por %p108, %p109
      %p112 = scmp.ne.s32.totalorder %s97, %s111
      %p113 = scmp.eq.s32.totalorder %s24, 0
      %p114 = por %p112, %p113
      %s116 = sadd.s32 %s115, 1
      %p119 = scmp.eq.s32.totalorder %s18, 1
      %p120 = scmp.ne.s32.totalorder %s115, %s117
      %p121 = scmp.eq.s32.totalorder %s18, 0
      %p122 = por %p120, %p121
      %p123 = scmp.ne.s32.totalorder %s115, %s117
      %p124 = scmp.eq.s32.totalorder %s23, 1
      %p125 = por %p123, %p124
      %p126 = scmp.ne.s32.totalorder %s117, %s118
      %p127 = scmp.eq.s32.totalorder %s23, 0
      %p128 = por %p126, %p127
      %p129 = scmp.ne.s32.totalorder %s117, %s118
      %p130 = scmp.eq.s32.totalorder %s24, 1
      %p131 = por %p129, %p130
      %p133 = scmp.ne.s32.totalorder %s118, %s132
      %p134 = scmp.eq.s32.totalorder %s24, 0
      %p135 = por %p133, %p134
      %s136 = ssub.s32 %s18, %s25
      %p137 = scmp.eq.s32.totalorder %s136, 0
      %s139 = sadd.s32 %s138, 1
      %s140 = scalar_select %p137, %s138, %s139
      %p143 = pneg %p137
      %p144 = scmp.eq.s32.totalorder %s18, 1
      %p145 = por %p143, %p144
      %p146 = scmp.ne.s32.totalorder %s138, %s141
      %p147 = scmp.eq.s32.totalorder %s18, 0
      %p148 = por %p146, %p147
      %p149 = scmp.ne.s32.totalorder %s138, %s141
      %p150 = scmp.eq.s32.totalorder %s23, 1
      %p151 = por %p149, %p150
      %p152 = scmp.ne.s32.totalorder %s141, %s142
      %p153 = scmp.eq.s32.totalorder %s23, 0
      %p154 = por %p152, %p153
      %p155 = scmp.ne.s32.totalorder %s141, %s142
      %p156 = scmp.eq.s32.totalorder %s24, 1
      %p157 = por %p155, %p156
      %p159 = scmp.ne.s32.totalorder %s142, %s158
      %p160 = scmp.eq.s32.totalorder %s24, 0
      %p161 = por %p159, %p160
      %p162 = scmp.le.s32.totalorder 1, %s18
      %p163 = scmp.lt.s32.totalorder %s18, 3
      %p164 = pnand %p162, %p163
      %p165 = pneg %p164
      // Predicated region
      $region9: #{tpu_custom_call.1} parent=5 // pred_check
        _
      $region10: #{tpu_custom_call.1} parent=5 // pred_check_branch
        %167 = sbr.rel (%p164) target = $region12
      $region11: #{tpu_custom_call.1} parent=5 // pred_region
        %s168 = ssub.s32 %s18, 1
        // Predicated region
        $region13: #{tpu_custom_call.1} parent=11 // pred_check
          %p169 = pneg %p65
        $region14: #{tpu_custom_call.1} parent=11 // pred_check_branch
          %171 = sbr.rel (%p169) target = $region16
        $region15: #{tpu_custom_call.1} parent=11 // pred_region
          %173 = vsyncadd [#allocation6], 0
          %s175 = sshll.u32 %s1, 4
          %s176 = int_to_ptr.hbm [resolvable:$true] %s175
          %s177 = sshll.u32 [#allocation5], 4
          %s178 = int_to_ptr.vmem [resolvable:$true] %s177
          %180 = dma.hbm_to_vmem [thread:$0]  %s176, 128, %s178, [#allocation6]
        $region16: #{tpu_custom_call.1} parent=11 // pred_fallthru
          _
        // Predicated region
        $region17: #{tpu_custom_call.1} parent=11 // pred_check
          %p181 = pneg %p86
        $region18: #{tpu_custom_call.1} parent=11 // pred_check_branch
          %183 = sbr.rel (%p181) target = $region20
        $region19: #{tpu_custom_call.1} parent=11 // pred_region
          _
        $region20: #{tpu_custom_call.1} parent=11 // pred_fallthru
          _
        // Predicated region
        $region21: #{tpu_custom_call.1} parent=11 // pred_check
          %p184 = pneg %p107
        $region22: #{tpu_custom_call.1} parent=11 // pred_check_branch
          %186 = sbr.rel (%p184) target = $region24
        $region23: #{tpu_custom_call.1} parent=11 // pred_region
          _
        $region24: #{tpu_custom_call.1} parent=11 // pred_fallthru
          _
        // Predicated region
        $region25: #{tpu_custom_call.1} parent=11 // pred_check
          %p187 = pneg %p128
        $region26: #{tpu_custom_call.1} parent=11 // pred_check_branch
          %189 = sbr.rel (%p187) target = $region28
        $region27: #{tpu_custom_call.1} parent=11 // pred_region
          _
        $region28: #{tpu_custom_call.1} parent=11 // pred_fallthru
          _
      $region12: #{tpu_custom_call.1} parent=5 // pred_fallthru
        _
      %p190 = scmp.lt.s32.totalorder %s18, 2
      // Predicated region
      $region29: #{tpu_custom_call.1} parent=5 // pred_check
        %p191 = pneg %p190
      $region30: #{tpu_custom_call.1} parent=5 // pred_check_branch
        %193 = sbr.rel (%p191) target = $region32
      $region31: #{tpu_custom_call.1} parent=5 // pred_region
        // Predicated region
        $region33: #{tpu_custom_call.1} parent=31 // pred_check
          %p194 = pneg %p38
        $region34: #{tpu_custom_call.1} parent=31 // pred_check_branch
          %196 = sbr.rel (%p194) target = $region36
        $region35: #{tpu_custom_call.1} parent=31 // pred_region
          %s197 = sand.u32 %s28, 1
          %s198 = scalar_lea.sflag [#allocation3], %s197
          %s199 = sand.u32 %s28, 1
          %s200 = smul.addr %s199, 8
          %s201 = scalar_lea.vmem [#allocation2], %s200
          %203 = vsyncadd %s198, 0
          %s204 = smul.addr %s18, 8
          %s205 = scalar_lea.hbm %s0, %s204
          %s207 = sshll.u32 %s205, 4
          %s208 = int_to_ptr.hbm [resolvable:$true] %s207
          %s209 = sshll.u32 %s201, 4
          %s210 = int_to_ptr.vmem [resolvable:$true] %s209
          %212 = dma.hbm_to_vmem [thread:$0]  %s208, 128, %s210, %s198
        $region36: #{tpu_custom_call.1} parent=31 // pred_fallthru
          _
      $region32: #{tpu_custom_call.1} parent=5 // pred_fallthru
        _
      %p213 = scmp.le.s32.totalorder 1, %s18
      %p214 = scmp.lt.s32.totalorder %s18, 3
      %p215 = pnand %p213, %p214
      %p216 = pneg %p215
      // Predicated region
      $region37: #{tpu_custom_call.1} parent=5 // pred_check
        _
      $region38: #{tpu_custom_call.1} parent=5 // pred_check_branch
        %218 = sbr.rel (%p215) target = $region40
      $region39: #{tpu_custom_call.1} parent=5 // pred_region
        %s219 = ssub.s32 %s18, 1
        %s220 = sand.u32 %s31, 1
        %s221 = scalar_lea.sflag [#allocation3], %s220
        %s222 = sand.u32 %s31, 1
        %s223 = smul.addr %s222, 8
        %s224 = scalar_lea.vmem [#allocation2], %s223
        // Predicated region
        $region41: #{tpu_custom_call.1} parent=39 // pred_check
          %p225 = pneg %p44
        $region42: #{tpu_custom_call.1} parent=39 // pred_check_branch
          %227 = sbr.rel (%p225) target = $region44
        $region43: #{tpu_custom_call.1} parent=39 // pred_region
          %229 = dma.done %s221, 128
        $region44: #{tpu_custom_call.1} parent=39 // pred_fallthru
          _
        // Predicated region
        $region45: #{tpu_custom_call.1} parent=39 // pred_check
          %p230 = pneg %p65
        $region46: #{tpu_custom_call.1} parent=39 // pred_check_branch
          %232 = sbr.rel (%p230) target = $region48
        $region47: #{tpu_custom_call.1} parent=39 // pred_region
          %234 = dma.done [#allocation6], 128
        $region48: #{tpu_custom_call.1} parent=39 // pred_fallthru
          _
        %s235 = sand.u32 %s31, 1
        %s236 = scalar_lea.sflag [#allocation3], %s235
        %s237 = sand.u32 %s31, 1
        %s238 = smul.addr %s237, 8
        %s239 = scalar_lea.vmem [#allocation2], %s238
        %p240 = pneg %p44
        %p241 = pneg %p41
        %p242 = pneg %p65
        %p243 = pneg %p62
        %p244 = pneg %p86
        %p245 = pneg %p83
        %p246 = pneg %p107
        %p247 = pneg %p104
        %p248 = pneg %p128
        %p249 = pneg %p125
        %p250 = pneg %p154
        %p251 = pneg %p151
        %s252 = sand.u32 %s141, 1
        %s253 = scalar_lea.sflag [#allocation4], %s252
        %s254 = sand.u32 %s141, 1
        %s255 = smul.addr %s254, 4
        %s256 = scalar_lea.vmem [#allocation7], %s255
        %v257 = vld [vmem:[%s224] sm:$0xff]
        %v258 = vld [vmem:[#allocation5] sm:$0xff]
        %v259 = vadd.f32 %v257, %v258
        %v260 = vld [vmem:[%s2] sm:$0x1]
        %v262 = vperm.slane %v260, 0
        %v264 = vadd.f32 %v259, %v262
        %vm265 = vcmask 261120
        %v266 = vsel %vm265, %v264, 0.0
        %267 = vadd.xlane.f32.xlu0 %v266
        %v268 = vpop.xlane.xlu0 %267
        %v269 = vrcp.pop 32.0
        %v270 = vmul.f32 32.0, %v269
        %v271 = vsub.f32 1.0, %v270
        %v272 = vmul.f32 %v269, %v271
        %v273 = vadd.f32 %v269, %v272
        %vm274 = vweird.f32 %v269
        %v275 = vsel %vm274, %v269, %v273
        %v276 = vmul.f32 %v268, %v275
        %v277 = vsub.f32 %v264, %v276
        %v278 = vmul.f32 %v277, %v277
        %v279 = vsel %vm265, %v278, 0.0
        %280 = vadd.xlane.f32.xlu0 %v279
        %v281 = vpop.xlane.xlu0 %280
        %v282 = vmul.f32 %v281, %v275
        %v283 = vadd.f32 %v282, 1e-12
        %v284 = vrsqrt.pop %v283
        %v285 = vmul.f32 %v284, %v283
        %v286 = vmul.f32 %v285, %v284
        %v287 = vmul.f32 0.5, %v286
        %v288 = vsub.f32 1.5, %v287
        %v289 = vmul.f32 %v284, %v288
        %vm290 = vweird.f32 %v283
        %vm291 = vweird.f32 %v284
        %vm292 = vmor %vm290, %vm291
        %v293 = vsel %vm292, %v284, %v289
        %v294 = vmul.f32 %v277, %v293
        %v295 = vld [vmem:[%s3] sm:$0x1]
        %v297 = vperm.slane %v295, 0
        %v299 = vmul.f32 %v294, %v297
        %v300 = vld [vmem:[%s4] sm:$0x1]
        %v302 = vperm.slane %v300, 0
        %v304 = vadd.f32 %v299, %v302
        %v305 = vpack.c.bf16 %v304, %v304
        %vm306 = vcmask 257024
        %307 = vst.msk [vmem:[%s256] sm:$0xf] %vm306, %v305
        %s308 = sand.u32 %s141, 1
        %s309 = scalar_lea.sflag [#allocation4], %s308
        %s310 = sand.u32 %s141, 1
        %s311 = smul.addr %s310, 4
        %s312 = scalar_lea.vmem [#allocation7], %s311
        // Predicated region
        $region49: #{tpu_custom_call.1} parent=39 // pred_check
          %p313 = pneg %p151
        $region50: #{tpu_custom_call.1} parent=39 // pred_check_branch
          %315 = sbr.rel (%p313) target = $region52
        $region51: #{tpu_custom_call.1} parent=39 // pred_region
          %317 = vsyncadd %s309, 0
          %s318 = smul.addr %s23, 4
          %s319 = scalar_lea.hbm %s5, %s318
          %s321 = sshll.u32 %s312, 4
          %s322 = int_to_ptr.vmem [resolvable:$true] %s321
          %s323 = sshll.u32 %s319, 4
          %s324 = int_to_ptr.hbm [resolvable:$true] %s323
          %326 = dma.vmem_to_hbm [thread:$0]  %s322, 64, %s324, %s309
        $region52: #{tpu_custom_call.1} parent=39 // pred_fallthru
          _
      $region40: #{tpu_custom_call.1} parent=5 // pred_fallthru
        _
      %p327 = scmp.le.s32.totalorder 2, %s18
      // Predicated region
      $region53: #{tpu_custom_call.1} parent=5 // pred_check
        %p328 = pneg %p327
      $region54: #{tpu_custom_call.1} parent=5 // pred_check_branch
        %330 = sbr.rel (%p328) target = $region56
      $region55: #{tpu_custom_call.1} parent=5 // pred_region
        %s331 = ssub.s32 %s18, 2
        // Predicated region
        $region57: #{tpu_custom_call.1} parent=55 // pred_check
          %p332 = pneg %p157
        $region58: #{tpu_custom_call.1} parent=55 // pred_check_branch
          %334 = sbr.rel (%p332) target = $region60
        $region59: #{tpu_custom_call.1} parent=55 // pred_region
          %s335 = sand.u32 %s142, 1
          %s336 = scalar_lea.sflag [#allocation4], %s335
          %s337 = sand.u32 %s142, 1
          %s338 = smul.addr %s337, 4
          %s339 = scalar_lea.vmem [#allocation7], %s338
          %341 = dma.done %s336, 64
        $region60: #{tpu_custom_call.1} parent=55 // pred_fallthru
          _
      $region56: #{tpu_custom_call.1} parent=5 // pred_fallthru
        _
    $region6: #{tpu_custom_call.1} parent=1 // loop_footer
      %s22 = sadd.s32 1, %s18
    $region7: #{tpu_custom_call.1} parent=1 // loop_footer_branch
      %17 = sbr.rel target = $region3
    $region8: #{tpu_custom_call.1} parent=1 // loop_exit
      _
    %342 = vsyncpa [#allocation3], 1
    %s343 = scalar_lea.sflag [#allocation3], 1
    %344 = vsyncpa %s343, 1
    %345 = vsyncpa [#allocation6], 1
    %346 = vsyncpa [#allocation4], 1
    %s347 = scalar_lea.sflag [#allocation4], 1
    %348 = vsyncpa %s347, 1

</llo_original>
